<compile_context>
chip_gen: v5e
topology: v5e:2x2
jax: 0.10.0
libtpu: 0.0.40
codegen_flags: <defaults>
</compile_context>

<pallas_src>
import jax
import jax.numpy as jnp
from jax.experimental import pallas as pl
from jax.experimental.pallas import tpu as pltpu


def build_relative_index(ih, iw):
    """Replicates the PyTorch buffer `relative_index` (flattened)."""
    coords = jnp.stack(jnp.meshgrid(jnp.arange(ih), jnp.arange(iw), indexing="ij"))
    coords = coords.reshape(2, -1)                         # (2, N)
    rel = coords[:, :, None] - coords[:, None, :]          # (2, N, N)
    rel = rel.at[0].add(ih - 1)
    rel = rel.at[1].add(iw - 1)
    rel = rel.at[0].multiply(2 * iw - 1)
    rel = jnp.transpose(rel, (1, 2, 0))                    # (N, N, 2)
    return rel.sum(-1).reshape(-1)                         # (N*N,)


def gather_relative_bias(table, rel_index, n_tokens, heads):
    """table: ((2ih-1)*(2iw-1), heads) -> dense bias (heads, N, N)."""
    rb = table[rel_index]                                  # (N*N, heads)
    return rb.reshape(n_tokens, n_tokens, heads).transpose(2, 0, 1)


def attention_forward(x, w_qkv, bias_hnn, w_out, b_out, *,
                      heads, dim_head, scale, block_batch=None):
    B, n, inp = x.shape
    inner = heads * dim_head
    assert w_qkv.shape == (inp, 3 * inner)
    oup = w_out.shape[1]
    d = dim_head
    bf16 = jnp.bfloat16

    # --- batch packing: tb*n rows per projection matmul, but keep >= 2
    #     parallel grid steps when B >= 2 (v7x has 2 TensorCores). ----------
    if block_batch is None:
        tb = max(1, min(B, 128 // max(n, 1)))
        if B >= 2:
            tb = min(tb, max(1, B // 2))
        while B % tb:
            tb -= 1
    else:
        tb = block_batch
        assert B % tb == 0

    # --- weight layout prep (one-time, tiny; a real model would store these
    #     in this layout).  Head-major column grouping matches the PyTorch
    #     rearrange 'b n (h d) -> b h n d'. --------------------------------
    def split_heads(w):                                     # (inp, inner) -> (heads, inp, d)
        return w.reshape(inp, heads, d).transpose(1, 0, 2)

    w_q = split_heads(w_qkv[:, :inner]).astype(bf16)
    w_k = split_heads(w_qkv[:, inner:2 * inner]).astype(bf16)
    w_v = split_heads(w_qkv[:, 2 * inner:]).astype(bf16)
    w_o = w_out.reshape(heads, d, oup).astype(bf16)         # rows are (h, d)-major
    b_o = b_out.reshape(1, oup).astype(jnp.float32)
    bias_hnn = bias_hnn.astype(jnp.float32)

    def kernel(x_ref, wq_ref, wk_ref, wv_ref, bias_ref, wo_ref, bo_ref,
               o_ref, acc_ref):
        h = pl.program_id(1)

        @pl.when(h == 0)
        def _init():
            acc_ref[...] = jnp.zeros_like(acc_ref)

        # Single full-block read, free leading-dim reshape, bf16 MXU operands.
        x_flat = x_ref[...].reshape(tb * n, inp).astype(bf16)

        # This head's projections: no unaligned column slices anywhere.
        q = jnp.dot(x_flat, wq_ref[0], preferred_element_type=jnp.float32)
        k = jnp.dot(x_flat, wk_ref[0], preferred_element_type=jnp.float32)
        v = jnp.dot(x_flat, wv_ref[0], preferred_element_type=jnp.float32)

        q = (q * scale).reshape(tb, n, d).astype(bf16)       # scale folded into q
        k = k.reshape(tb, n, d).astype(bf16)
        v = v.reshape(tb, n, d).astype(bf16)

        # Scores, batched over the packed batch tile; contract d directly
        # (no k.T -> no XLU transpose).
        s = jax.lax.dot_general(q, k, (((2,), (2,)), ((0,), (0,))),
                                preferred_element_type=jnp.float32)   # (tb, n, n)
        s = s + bias_ref[...]                                          # (1, n, n) bcast

        # Softmax strictly in f32 (v5e-safe); denominator via EUP reciprocal.
        s = s - jnp.max(s, axis=-1, keepdims=True)
        e = jnp.exp(s)
        p = e * pl.reciprocal(jnp.sum(e, axis=-1, keepdims=True), approx=True)

        # Attention output for this head, batched over tb.
        o = jax.lax.dot_general(p.astype(bf16), v, (((2,), (1,)), ((0,), (0,))),
                                preferred_element_type=jnp.float32)   # (tb, n, d)

        # This head's slice of the output projection, accumulated over the
        # heads grid axis (replaces the head concat entirely).
        acc_ref[...] += jnp.dot(o.reshape(tb * n, d).astype(bf16), wo_ref[0],
                                preferred_element_type=jnp.float32)

        @pl.when(h == pl.num_programs(1) - 1)
        def _store():
            y = acc_ref[...] + bo_ref[...]
            o_ref[...] = y.reshape(tb, n, oup).astype(o_ref.dtype)     # one store

    return pl.pallas_call(
        kernel,
        out_shape=jax.ShapeDtypeStruct((B, n, oup), x.dtype),
        grid=(B // tb, heads),
        in_specs=[
            pl.BlockSpec((tb, n, inp), lambda i, h: (i, 0, 0)),   # x (resident across h)
            pl.BlockSpec((1, inp, d), lambda i, h: (h, 0, 0)),    # W_q[h]
            pl.BlockSpec((1, inp, d), lambda i, h: (h, 0, 0)),    # W_k[h]
            pl.BlockSpec((1, inp, d), lambda i, h: (h, 0, 0)),    # W_v[h]
            pl.BlockSpec((1, n, n), lambda i, h: (h, 0, 0)),      # rel. bias[h]
            pl.BlockSpec((1, d, oup), lambda i, h: (h, 0, 0)),    # W_out[h]
            pl.BlockSpec((1, oup), lambda i, h: (0, 0)),          # b_out
        ],
        out_specs=pl.BlockSpec((tb, n, oup), lambda i, h: (i, 0, 0)),
        scratch_shapes=[pltpu.VMEM((tb * n, oup), jnp.float32)],
        compiler_params=pltpu.CompilerParams(
            dimension_semantics=("parallel", "arbitrary")),
    )(x, w_q, w_k, w_v, bias_hnn, w_o, b_o)


def _ref_attention(x, w_qkv, bias_hnn, w_out, b_out, scale):
    """Pure-JAX reference mirroring the PyTorch forward (f32, HIGHEST)."""
    hp = jax.lax.Precision.HIGHEST
    qkv = jnp.einsum("bni,io->bno", x, w_qkv, precision=hp)
    q, k, v = jnp.split(qkv, 3, axis=-1)
    B, n, inner = q.shape
    H = bias_hnn.shape[0]
    d = inner // H

    def to_heads(t):
        return t.reshape(B, n, H, d).transpose(0, 2, 1, 3)

    q = to_heads(q) * scale
    k = to_heads(k)
    v = to_heads(v)
    dots = jnp.einsum("bhnd,bhmd->bhnm", q, k, precision=hp) + bias_hnn[None]
    attn = jax.nn.softmax(dots, axis=-1)
    out = jnp.einsum("bhnm,bhmd->bhnd", attn, v, precision=hp)
    out = out.transpose(0, 2, 1, 3).reshape(B, n, inner)
    return jnp.einsum("bnd,do->bno", out, w_out, precision=hp) + b_out


if __name__ == "__main__":
    # Small shapes consistent with the module: image_size=(4,4) -> N=16 tokens.
    B = 2
    ih, iw = 4, 4
    n_tok = ih * iw                  # 16
    inp, oup = 32, 32
    heads, dim_head = 8, 32
    inner = heads * dim_head         # 256
    scale = dim_head ** (-0.5)

    key = jax.random.PRNGKey(0)
    k_x, k_qkv, k_out, k_b, k_tab = jax.random.split(key, 5)

    x = jax.random.normal(k_x, (B, n_tok, inp), dtype=jnp.float32)
    w_qkv = 0.1 * jax.random.normal(k_qkv, (inp, 3 * inner), dtype=jnp.float32)
    w_out = 0.05 * jax.random.normal(k_out, (inner, oup), dtype=jnp.float32)
    b_out = 0.05 * jax.random.normal(k_b, (oup,), dtype=jnp.float32)
    # relative_bias_table is zero-initialized in PyTorch; randomize so the
    # gather + bias-add path is actually exercised.
    bias_table = 0.02 * jax.random.normal(
        k_tab, ((2 * ih - 1) * (2 * iw - 1), heads), dtype=jnp.float32)

    rel_index = build_relative_index(ih, iw)
    bias_hnn = gather_relative_bias(bias_table, rel_index, n_tok, heads)

    out = attention_forward(x, w_qkv, bias_hnn, w_out, b_out,
                            heads=heads, dim_head=dim_head, scale=scale)
    out = jax.block_until_ready(out)

    ref = _ref_attention(x, w_qkv, bias_hnn, w_out, b_out, scale)
    assert out.shape == ref.shape
    # bf16 MXU operands with f32 accumulation -> ~1% relative error budget.
    assert jnp.allclose(out, ref, atol=2e-2, rtol=2e-2), \
        "Pallas kernel mismatch vs reference"

    print("KERNEL_OK")
</pallas_src>

<mosaic_0001>
module attributes {stable_mosaic.version = 11 : i64} {
  func.func @kernel(%arg0: i32, %arg1: i32, %arg2: memref<1x16x32xf32, #tpu.memory_space<vmem>>, %arg3: memref<1x32x32xbf16, #tpu.memory_space<vmem>>, %arg4: memref<1x32x32xbf16, #tpu.memory_space<vmem>>, %arg5: memref<1x32x32xbf16, #tpu.memory_space<vmem>>, %arg6: memref<1x16x16xf32, #tpu.memory_space<vmem>>, %arg7: memref<1x32x32xbf16, #tpu.memory_space<vmem>>, %arg8: memref<1x32xf32, #tpu.memory_space<vmem>>, %arg9: memref<1x16x32xf32, #tpu.memory_space<vmem>>, %arg10: memref<16x32xf32, #tpu.memory_space<vmem>>) attributes {dimension_semantics = [#tpu.dimension_semantics<parallel>, #tpu.dimension_semantics<arbitrary>], iteration_bounds = array<i64: 2, 8>, scalar_prefetch = 0 : i64, scratch_operands = 1 : i64, tpu.core_type = #tpu.core_type<tc>, window_params = [{transform_indices = @transform_0, window_bounds = array<i64: 1, 16, 32>}, {transform_indices = @transform_1, window_bounds = array<i64: 1, 32, 32>}, {transform_indices = @transform_2, window_bounds = array<i64: 1, 32, 32>}, {transform_indices = @transform_3, window_bounds = array<i64: 1, 32, 32>}, {transform_indices = @transform_4, window_bounds = array<i64: 1, 16, 16>}, {transform_indices = @transform_5, window_bounds = array<i64: 1, 32, 32>}, {pipeline_mode = #tpu.pipeline_mode<synchronous>, transform_indices = @transform_6, window_bounds = array<i64: 1, 32>}, {transform_indices = @transform_7, window_bounds = array<i64: 1, 16, 32>}]} {
    %c0_i32 = arith.constant 0 : i32
    %0 = arith.cmpi eq, %arg1, %c0_i32 : i32
    %1 = arith.extui %0 : i1 to i32
    %c0_i32_0 = arith.constant 0 : i32
    %2 = arith.cmpi ne, %1, %c0_i32_0 : i32
    scf.if %2 {
      %cst_31 = arith.constant 0.000000e+00 : f32
      %49 = vector.broadcast %cst_31 : f32 to vector<16x32xf32>
      %c0_32 = arith.constant 0 : index
      %c0_33 = arith.constant 0 : index
      %50 = vector.load %arg10[%c0_32, %c0_33] : memref<16x32xf32, #tpu.memory_space<vmem>>, vector<16x32xf32>
      tpu.vector_store %arg10[%c0_32, %c0_33], %49 {strides = array<i32>} : memref<16x32xf32, #tpu.memory_space<vmem>>, vector<16x32xf32>,
    } else {
    }
    %c0 = arith.constant 0 : index
    %c0_1 = arith.constant 0 : index
    %c0_2 = arith.constant 0 : index
    %3 = vector.load %arg2[%c0, %c0_1, %c0_2] : memref<1x16x32xf32, #tpu.memory_space<vmem>>, vector<1x16x32xf32>
    %4 = vector.shape_cast %3 : vector<1x16x32xf32> to vector<16x32xf32>
    %5 = arith.truncf %4 : vector<16x32xf32> to vector<16x32xbf16>
    %c0_3 = arith.constant 0 : index
    %c0_4 = arith.constant 0 : index
    %c0_5 = arith.constant 0 : index
    %6 = vector.load %arg3[%c0_3, %c0_4, %c0_5] : memref<1x32x32xbf16, #tpu.memory_space<vmem>>, vector<1x32x32xbf16>
    %7 = vector.shape_cast %6 : vector<1x32x32xbf16> to vector<32x32xbf16>
    %cst = arith.constant dense<0.000000e+00> : vector<16x32xf32>
    %8 = tpu.matmul %5, %7, %cst {dimension_numbers = #tpu.dot_dimension_numbers<[1], [0], [0], [1], [0, 0, 1, 1], [], []>} : vector<16x32xbf16>, vector<32x32xbf16>, vector<16x32xf32> -> vector<16x32xf32>
    %c0_6 = arith.constant 0 : index
    %c0_7 = arith.constant 0 : index
    %c0_8 = arith.constant 0 : index
    %9 = vector.load %arg4[%c0_6, %c0_7, %c0_8] : memref<1x32x32xbf16, #tpu.memory_space<vmem>>, vector<1x32x32xbf16>
    %10 = vector.shape_cast %9 : vector<1x32x32xbf16> to vector<32x32xbf16>
    %cst_9 = arith.constant dense<0.000000e+00> : vector<16x32xf32>
    %11 = tpu.matmul %5, %10, %cst_9 {dimension_numbers = #tpu.dot_dimension_numbers<[1], [0], [0], [1], [0, 0, 1, 1], [], []>} : vector<16x32xbf16>, vector<32x32xbf16>, vector<16x32xf32> -> vector<16x32xf32>
    %c0_10 = arith.constant 0 : index
    %c0_11 = arith.constant 0 : index
    %c0_12 = arith.constant 0 : index
    %12 = vector.load %arg5[%c0_10, %c0_11, %c0_12] : memref<1x32x32xbf16, #tpu.memory_space<vmem>>, vector<1x32x32xbf16>
    %13 = vector.shape_cast %12 : vector<1x32x32xbf16> to vector<32x32xbf16>
    %cst_13 = arith.constant dense<0.000000e+00> : vector<16x32xf32>
    %14 = tpu.matmul %5, %13, %cst_13 {dimension_numbers = #tpu.dot_dimension_numbers<[1], [0], [0], [1], [0, 0, 1, 1], [], []>} : vector<16x32xbf16>, vector<32x32xbf16>, vector<16x32xf32> -> vector<16x32xf32>
    %cst_14 = arith.constant 0.176776692 : f32
    %15 = vector.broadcast %cst_14 : f32 to vector<16x32xf32>
    %16 = arith.mulf %8, %15 : vector<16x32xf32>
    %17 = vector.shape_cast %16 : vector<16x32xf32> to vector<1x16x32xf32>
    %18 = arith.truncf %17 : vector<1x16x32xf32> to vector<1x16x32xbf16>
    %19 = vector.shape_cast %11 : vector<16x32xf32> to vector<1x16x32xf32>
    %20 = arith.truncf %19 : vector<1x16x32xf32> to vector<1x16x32xbf16>
    %21 = vector.shape_cast %14 : vector<16x32xf32> to vector<1x16x32xf32>
    %22 = arith.truncf %21 : vector<1x16x32xf32> to vector<1x16x32xbf16>
    %cst_15 = arith.constant dense<0.000000e+00> : vector<1x16x16xf32>
    %23 = tpu.matmul %18, %20, %cst_15 {dimension_numbers = #tpu.dot_dimension_numbers<[2], [2], [1], [1], [0, 0, 0, 1, 1, 1], [0], [0]>} : vector<1x16x32xbf16>, vector<1x16x32xbf16>, vector<1x16x16xf32> -> vector<1x16x16xf32>
    %c0_16 = arith.constant 0 : index
    %c0_17 = arith.constant 0 : index
    %c0_18 = arith.constant 0 : index
    %24 = vector.load %arg6[%c0_16, %c0_17, %c0_18] : memref<1x16x16xf32, #tpu.memory_space<vmem>>, vector<1x16x16xf32>
    %25 = arith.addf %23, %24 : vector<1x16x16xf32>
    %cst_19 = arith.constant dense<0xFF800000> : vector<1x16xf32>
    %26 = vector.multi_reduction <maximumf>, %25, %cst_19 [2] : vector<1x16x16xf32> to vector<1x16xf32>
    %27 = vector.shape_cast %26 : vector<1x16xf32> to vector<1x16x1xf32>
    %28 = vector.broadcast %27 : vector<1x16x1xf32> to vector<1x16x16xf32>
    %29 = arith.subf %25, %28 : vector<1x16x16xf32>
    %30 = math.exp %29 : vector<1x16x16xf32>
    %cst_20 = arith.constant dense<0.000000e+00> : vector<1x16xf32>
    %31 = vector.multi_reduction <add>, %30, %cst_20 [2] : vector<1x16x16xf32> to vector<1x16xf32>
    %32 = vector.shape_cast %31 : vector<1x16xf32> to vector<1x16x1xf32>
    %33 = tpu.reciprocal %32 {approx = true} : vector<1x16x1xf32> -> vector<1x16x1xf32>
    %34 = vector.broadcast %33 : vector<1x16x1xf32> to vector<1x16x16xf32>
    %35 = arith.mulf %30, %34 : vector<1x16x16xf32>
    %36 = arith.truncf %35 : vector<1x16x16xf32> to vector<1x16x16xbf16>
    %cst_21 = arith.constant dense<0.000000e+00> : vector<1x16x32xf32>
    %37 = tpu.matmul %36, %22, %cst_21 {dimension_numbers = #tpu.dot_dimension_numbers<[2], [1], [1], [2], [0, 0, 0, 1, 1, 2], [0], [0]>} : vector<1x16x16xbf16>, vector<1x16x32xbf16>, vector<1x16x32xf32> -> vector<1x16x32xf32>
    %c0_22 = arith.constant 0 : index
    %c0_23 = arith.constant 0 : index
    %38 = vector.load %arg10[%c0_22, %c0_23] : memref<16x32xf32, #tpu.memory_space<vmem>>, vector<16x32xf32>
    %39 = vector.shape_cast %37 : vector<1x16x32xf32> to vector<16x32xf32>
    %40 = arith.truncf %39 : vector<16x32xf32> to vector<16x32xbf16>
    %c0_24 = arith.constant 0 : index
    %c0_25 = arith.constant 0 : index
    %c0_26 = arith.constant 0 : index
    %41 = vector.load %arg7[%c0_24, %c0_25, %c0_26] : memref<1x32x32xbf16, #tpu.memory_space<vmem>>, vector<1x32x32xbf16>
    %42 = vector.shape_cast %41 : vector<1x32x32xbf16> to vector<32x32xbf16>
    %cst_27 = arith.constant dense<0.000000e+00> : vector<16x32xf32>
    %43 = tpu.matmul %40, %42, %cst_27 {dimension_numbers = #tpu.dot_dimension_numbers<[1], [0], [0], [1], [0, 0, 1, 1], [], []>} : vector<16x32xbf16>, vector<32x32xbf16>, vector<16x32xf32> -> vector<16x32xf32>
    %44 = arith.addf %38, %43 : vector<16x32xf32>
    %c0_28 = arith.constant 0 : index
    %c0_29 = arith.constant 0 : index
    %45 = vector.load %arg10[%c0_28, %c0_29] : memref<16x32xf32, #tpu.memory_space<vmem>>, vector<16x32xf32>
    tpu.vector_store %arg10[%c0_28, %c0_29], %44 {strides = array<i32>} : memref<16x32xf32, #tpu.memory_space<vmem>>, vector<16x32xf32>,
    %c7_i32 = arith.constant 7 : i32
    %46 = arith.cmpi eq, %arg1, %c7_i32 : i32
    %47 = arith.extui %46 : i1 to i32
    %c0_i32_30 = arith.constant 0 : i32
    %48 = arith.cmpi ne, %47, %c0_i32_30 : i32
    scf.if %48 {
      %c0_31 = arith.constant 0 : index
      %c0_32 = arith.constant 0 : index
      %49 = vector.load %arg10[%c0_31, %c0_32] : memref<16x32xf32, #tpu.memory_space<vmem>>, vector<16x32xf32>
      %c0_33 = arith.constant 0 : index
      %c0_34 = arith.constant 0 : index
      %50 = vector.load %arg8[%c0_33, %c0_34] : memref<1x32xf32, #tpu.memory_space<vmem>>, vector<1x32xf32>
      %51 = vector.broadcast %50 : vector<1x32xf32> to vector<16x32xf32>
      %52 = arith.addf %49, %51 : vector<16x32xf32>
      %53 = vector.shape_cast %52 : vector<16x32xf32> to vector<1x16x32xf32>
      %c0_35 = arith.constant 0 : index
      %c0_36 = arith.constant 0 : index
      %c0_37 = arith.constant 0 : index
      %54 = vector.load %arg9[%c0_35, %c0_36, %c0_37] : memref<1x16x32xf32, #tpu.memory_space<vmem>>, vector<1x16x32xf32>
      tpu.vector_store %arg9[%c0_35, %c0_36, %c0_37], %53 {strides = array<i32>} : memref<1x16x32xf32, #tpu.memory_space<vmem>>, vector<1x16x32xf32>,
    } else {
    }
    return
  }
  func.func @transform_0(%arg0: i32, %arg1: i32) -> (i32, i32, i32) {
    %c0_i32 = arith.constant 0 : i32
    %c0_i32_0 = arith.constant 0 : i32
    %c0_i32_1 = arith.constant 0 : i32
    return %arg0, %c0_i32, %c0_i32_0 : i32, i32, i32
  }
  func.func @transform_1(%arg0: i32, %arg1: i32) -> (i32, i32, i32) {
    %c0_i32 = arith.constant 0 : i32
    %c0_i32_0 = arith.constant 0 : i32
    %c0_i32_1 = arith.constant 0 : i32
    return %arg1, %c0_i32, %c0_i32_0 : i32, i32, i32
  }
  func.func @transform_2(%arg0: i32, %arg1: i32) -> (i32, i32, i32) {
    %c0_i32 = arith.constant 0 : i32
    %c0_i32_0 = arith.constant 0 : i32
    %c0_i32_1 = arith.constant 0 : i32
    return %arg1, %c0_i32, %c0_i32_0 : i32, i32, i32
  }
  func.func @transform_3(%arg0: i32, %arg1: i32) -> (i32, i32, i32) {
    %c0_i32 = arith.constant 0 : i32
    %c0_i32_0 = arith.constant 0 : i32
    %c0_i32_1 = arith.constant 0 : i32
    return %arg1, %c0_i32, %c0_i32_0 : i32, i32, i32
  }
  func.func @transform_4(%arg0: i32, %arg1: i32) -> (i32, i32, i32) {
    %c0_i32 = arith.constant 0 : i32
    %c0_i32_0 = arith.constant 0 : i32
    %c0_i32_1 = arith.constant 0 : i32
    return %arg1, %c0_i32, %c0_i32_0 : i32, i32, i32
  }
  func.func @transform_5(%arg0: i32, %arg1: i32) -> (i32, i32, i32) {
    %c0_i32 = arith.constant 0 : i32
    %c0_i32_0 = arith.constant 0 : i32
    %c0_i32_1 = arith.constant 0 : i32
    return %arg1, %c0_i32, %c0_i32_0 : i32, i32, i32
  }
  func.func @transform_6(%arg0: i32, %arg1: i32) -> (i32, i32) {
    %c0_i32 = arith.constant 0 : i32
    %c0_i32_0 = arith.constant 0 : i32
    %c0_i32_1 = arith.constant 0 : i32
    return %c0_i32, %c0_i32_0 : i32, i32
  }
  func.func @transform_7(%arg0: i32, %arg1: i32) -> (i32, i32, i32) {
    %c0_i32 = arith.constant 0 : i32
    %c0_i32_0 = arith.constant 0 : i32
    %c0_i32_1 = arith.constant 0 : i32
    return %arg0, %c0_i32, %c0_i32_0 : i32, i32, i32
  }
}

</mosaic_0001>

<llo_original>
// kernel: tpu_custom_call.1
$region0: #{tpu_custom_call.1}
  #allocation0 [shape = 'u32[]', space=smem, size = 0x4, offset = 0x4, fixed_abs, tag = 'smem constant byte address 0x4 - core index']
  #allocation1 [shape = 'u32[72,128]{1,0:T(1,128)}', space=vmem, size = 0x9000, scoped, tag = 'internal scratch']
  #allocation2 [shape = 'f32[16,32]{1,0:T(8,128)}', space=vmem, size = 0x2000, scoped, tag = 'scratch operand']
  %s0 = inlined_call_operand.hbm [shape: f32[2,16,32], index: 0, kind: input, shape index: {}]
  %s1 = inlined_call_operand.hbm [shape: bf16[8,32,32], index: 1, kind: input, shape index: {}]
  %s2 = inlined_call_operand.hbm [shape: bf16[8,32,32], index: 2, kind: input, shape index: {}]
  %s3 = inlined_call_operand.hbm [shape: bf16[8,32,32], index: 3, kind: input, shape index: {}]
  %s4 = inlined_call_operand.hbm [shape: f32[8,16,16], index: 4, kind: input, shape index: {}]
  %s5 = inlined_call_operand.hbm [shape: bf16[8,32,32], index: 5, kind: input, shape index: {}]
  %s6 = inlined_call_operand.vmem [shape: f32[1,32], index: 6, kind: input, shape index: {}]
  %s7 = inlined_call_operand.hbm [shape: f32[2,16,32], index: 7, kind: output, shape index: {}]
  %s8 = sld [smem:[#allocation0]]
  $region93: #{tpu_custom_call.1} parent=0
    _
  %s10 = ssub.s32 1, %s8
  %s11 = scalar_select 0, %s10, %s8
  $region1: #{tpu_custom_call.1} parent=0
    #allocation3 [shape = 'u8[16384]{0}', space=vmem, size = 0x4000, scoped, tag = 'input window, operand 0']
    #allocation4 [shape = 's32[2]{0}', space=sflag, size = 0x8, scoped, tag = 'scoped memory for tpu_custom_call.1']
    #allocation5 [shape = 's32[2]{0}', space=sflag, size = 0x8, scoped, tag = 'scoped memory for tpu_custom_call.1']
    #allocation6 [shape = 'u8[16384]{0}', space=vmem, size = 0x4000, scoped, tag = 'input window, operand 1']
    #allocation7 [shape = 's32[2]{0}', space=sflag, size = 0x8, scoped, tag = 'scoped memory for tpu_custom_call.1']
    #allocation8 [shape = 'u8[16384]{0}', space=vmem, size = 0x4000, scoped, tag = 'input window, operand 2']
    #allocation9 [shape = 'u8[16384]{0}', space=vmem, size = 0x4000, scoped, tag = 'input window, operand 3']
    #allocation10 [shape = 's32[2]{0}', space=sflag, size = 0x8, scoped, tag = 'scoped memory for tpu_custom_call.1']
    #allocation11 [shape = 'u8[16384]{0}', space=vmem, size = 0x4000, scoped, tag = 'input window, operand 4']
    #allocation12 [shape = 'u8[16384]{0}', space=vmem, size = 0x4000, scoped, tag = 'input window, operand 5']
    #allocation13 [shape = 's32[2]{0}', space=sflag, size = 0x8, scoped, tag = 'scoped memory for tpu_custom_call.1']
    #allocation14 [shape = 'u8[16384]{0}', space=vmem, size = 0x4000, scoped, tag = 'output window, operand 0']
    %12 = vsyncpa [#allocation4], 0
    %s13 = scalar_lea.sflag [#allocation4], 1
    %14 = vsyncpa %s13, 0
    %15 = vsyncpa [#allocation7], 0
    %s16 = scalar_lea.sflag [#allocation7], 1
    %17 = vsyncpa %s16, 0
    %18 = vsyncpa [#allocation10], 0
    %s19 = scalar_lea.sflag [#allocation10], 1
    %20 = vsyncpa %s19, 0
    %21 = vsyncpa [#allocation13], 0
    %s22 = scalar_lea.sflag [#allocation13], 1
    %23 = vsyncpa %s22, 0
    %24 = vsyncpa [#allocation5], 0
    %s25 = scalar_lea.sflag [#allocation5], 1
    %26 = vsyncpa %s25, 0
    loop: start=0, step=1, limit=18
    $region2: #{tpu_custom_call.1} parent=1 // loop_pre_header
      _
    $region3: #{tpu_custom_call.1} parent=1 // loop_header
      %s28 = sphi 0, %s32
      %p29 = scmp.ge.s32.totalorder %s28, 18
      %s35 = sphi 0, %s47
      %s36 = sphi 0, %s43
      %s37 = sphi 0, %s35
      %s38 = sphi 0, %s36
      %s39 = sphi 0, %s37
      %s40 = sphi 0, %s38
      %s50 = sphi 0, %s52
      %s53 = sphi 0, %s50
      %s54 = sphi 0, %s53
      %s70 = sphi 0, %s54
      %s76 = sphi 0, %s78
      %s79 = sphi 0, %s76
      %s80 = sphi 0, %s79
      %s96 = sphi 0, %s80
      %s102 = sphi 0, %s104
      %s105 = sphi 0, %s102
      %s106 = sphi 0, %s105
      %s122 = sphi 0, %s106
      %s128 = sphi 0, %s130
      %s131 = sphi 0, %s128
      %s132 = sphi 0, %s131
      %s148 = sphi 0, %s132
      %s154 = sphi 0, %s156
      %s157 = sphi 0, %s154
      %s158 = sphi 0, %s157
      %s174 = sphi 0, %s158
      %s180 = sphi 0, %s182
      %s183 = sphi 0, %s180
      %s184 = sphi 0, %s183
      %s200 = sphi 0, %s184
      %s204 = sphi 0, %s204
      %s206 = sphi 0, %s204
      %s207 = sphi 0, %s206
      %s221 = sphi 0, %s207
      %s227 = sphi 0, %s229
      %s230 = sphi 0, %s227
      %s231 = sphi 0, %s230
      %s247 = sphi 0, %s231
    $region4: #{tpu_custom_call.1} parent=1 // loop_header_branch
      %31 = sbr.rel (%p29) target = $region8
    $region5: #{tpu_custom_call.1} parent=1 // loop_body
      %s33 = ssub.s32 %s28, 1
      %s34 = ssub.s32 %s28, 2
      %s41 = sadd.s32 1, %s36
      %p42 = scmp.ge.s32.totalorder %s41, 8
      %s43 = scalar_select %p42, 0, %s41
      %s44 = sadd.s32 1, %s35
      %s45 = scalar_select %p42, %s44, %s35
      %p46 = scmp.ge.s32.totalorder %s45, 2
      %s47 = scalar_select %p46, 0, %s45
      %s48 = ssub.s32 %s35, %s47
      %p49 = scmp.eq.s32.totalorder %s48, 0
      %s51 = sadd.s32 %s50, 1
      %s52 = scalar_select %p49, %s50, %s51
      %p55 = pneg %p49
      %p56 = scmp.eq.s32.totalorder %s28, 15
      %p57 = por %p55, %p56
      %p58 = scmp.ne.s32.totalorder %s50, %s53
      %p59 = scmp.eq.s32.totalorder %s28, 0
      %p60 = por %p58, %p59
      %p61 = scmp.ne.s32.totalorder %s50, %s53
      %p62 = scmp.eq.s32.totalorder %s33, 15
      %p63 = por %p61, %p62
      %p64 = scmp.ne.s32.totalorder %s53, %s54
      %p65 = scmp.eq.s32.totalorder %s33, 0
      %p66 = por %p64, %p65
      %p67 = scmp.ne.s32.totalorder %s53, %s54
      %p68 = scmp.eq.s32.totalorder %s34, 15
      %p69 = por %p67, %p68
      %p71 = scmp.ne.s32.totalorder %s54, %s70
      %p72 = scmp.eq.s32.totalorder %s34, 0
      %p73 = por %p71, %p72
      %s74 = ssub.s32 %s36, %s43
      %p75 = scmp.eq.s32.totalorder %s74, 0
      %s77 = sadd.s32 %s76, 1
      %s78 = scalar_select %p75, %s76, %s77
      %p81 = pneg %p75
      %p82 = scmp.eq.s32.totalorder %s28, 15
      %p83 = por %p81, %p82
      %p84 = scmp.ne.s32.totalorder %s76, %s79
      %p85 = scmp.eq.s32.totalorder %s28, 0
      %p86 = por %p84, %p85
      %p87 = scmp.ne.s32.totalorder %s76, %s79
      %p88 = scmp.eq.s32.totalorder %s33, 15
      %p89 = por %p87, %p88
      %p90 = scmp.ne.s32.totalorder %s79, %s80
      %p91 = scmp.eq.s32.totalorder %s33, 0
      %p92 = por %p90, %p91
      %p93 = scmp.ne.s32.totalorder %s79, %s80
      %p94 = scmp.eq.s32.totalorder %s34, 15
      %p95 = por %p93, %p94
      %p97 = scmp.ne.s32.totalorder %s80, %s96
      %p98 = scmp.eq.s32.totalorder %s34, 0
      %p99 = por %p97, %p98
      %s100 = ssub.s32 %s36, %s43
      %p101 = scmp.eq.s32.totalorder %s100, 0
      %s103 = sadd.s32 %s102, 1
      %s104 = scalar_select %p101, %s102, %s103
      %p107 = pneg %p101
      %p108 = scmp.eq.s32.totalorder %s28, 15
      %p109 = por %p107, %p108
      %p110 = scmp.ne.s32.totalorder %s102, %s105
      %p111 = scmp.eq.s32.totalorder %s28, 0
      %p112 = por %p110, %p111
      %p113 = scmp.ne.s32.totalorder %s102, %s105
      %p114 = scmp.eq.s32.totalorder %s33, 15
      %p115 = por %p113, %p114
      %p116 = scmp.ne.s32.totalorder %s105, %s106
      %p117 = scmp.eq.s32.totalorder %s33, 0
      %p118 = por %p116, %p117
      %p119 = scmp.ne.s32.totalorder %s105, %s106
      %p120 = scmp.eq.s32.totalorder %s34, 15
      %p121 = por %p119, %p120
      %p123 = scmp.ne.s32.totalorder %s106, %s122
      %p124 = scmp.eq.s32.totalorder %s34, 0
      %p125 = por %p123, %p124
      %s126 = ssub.s32 %s36, %s43
      %p127 = scmp.eq.s32.totalorder %s126, 0
      %s129 = sadd.s32 %s128, 1
      %s130 = scalar_select %p127, %s128, %s129
      %p133 = pneg %p127
      %p134 = scmp.eq.s32.totalorder %s28, 15
      %p135 = por %p133, %p134
      %p136 = scmp.ne.s32.totalorder %s128, %s131
      %p137 = scmp.eq.s32.totalorder %s28, 0
      %p138 = por %p136, %p137
      %p139 = scmp.ne.s32.totalorder %s128, %s131
      %p140 = scmp.eq.s32.totalorder %s33, 15
      %p141 = por %p139, %p140
      %p142 = scmp.ne.s32.totalorder %s131, %s132
      %p143 = scmp.eq.s32.totalorder %s33, 0
      %p144 = por %p142, %p143
      %p145 = scmp.ne.s32.totalorder %s131, %s132
      %p146 = scmp.eq.s32.totalorder %s34, 15
      %p147 = por %p145, %p146
      %p149 = scmp.ne.s32.totalorder %s132, %s148
      %p150 = scmp.eq.s32.totalorder %s34, 0
      %p151 = por %p149, %p150
      %s152 = ssub.s32 %s36, %s43
      %p153 = scmp.eq.s32.totalorder %s152, 0
      %s155 = sadd.s32 %s154, 1
      %s156 = scalar_select %p153, %s154, %s155
      %p159 = pneg %p153
      %p160 = scmp.eq.s32.totalorder %s28, 15
      %p161 = por %p159, %p160
      %p162 = scmp.ne.s32.totalorder %s154, %s157
      %p163 = scmp.eq.s32.totalorder %s28, 0
      %p164 = por %p162, %p163
      %p165 = scmp.ne.s32.totalorder %s154, %s157
      %p166 = scmp.eq.s32.totalorder %s33, 15
      %p167 = por %p165, %p166
      %p168 = scmp.ne.s32.totalorder %s157, %s158
      %p169 = scmp.eq.s32.totalorder %s33, 0
      %p170 = por %p168, %p169
      %p171 = scmp.ne.s32.totalorder %s157, %s158
      %p172 = scmp.eq.s32.totalorder %s34, 15
      %p173 = por %p171, %p172
      %p175 = scmp.ne.s32.totalorder %s158, %s174
      %p176 = scmp.eq.s32.totalorder %s34, 0
      %p177 = por %p175, %p176
      %s178 = ssub.s32 %s36, %s43
      %p179 = scmp.eq.s32.totalorder %s178, 0
      %s181 = sadd.s32 %s180, 1
      %s182 = scalar_select %p179, %s180, %s181
      %p185 = pneg %p179
      %p186 = scmp.eq.s32.totalorder %s28, 15
      %p187 = por %p185, %p186
      %p188 = scmp.ne.s32.totalorder %s180, %s183
      %p189 = scmp.eq.s32.totalorder %s28, 0
      %p190 = por %p188, %p189
      %p191 = scmp.ne.s32.totalorder %s180, %s183
      %p192 = scmp.eq.s32.totalorder %s33, 15
      %p193 = por %p191, %p192
      %p194 = scmp.ne.s32.totalorder %s183, %s184
      %p195 = scmp.eq.s32.totalorder %s33, 0
      %p196 = por %p194, %p195
      %p197 = scmp.ne.s32.totalorder %s183, %s184
      %p198 = scmp.eq.s32.totalorder %s34, 15
      %p199 = por %p197, %p198
      %p201 = scmp.ne.s32.totalorder %s184, %s200
      %p202 = scmp.eq.s32.totalorder %s34, 0
      %p203 = por %p201, %p202
      %s205 = sadd.s32 %s204, 1
      %p208 = scmp.eq.s32.totalorder %s28, 15
      %p209 = scmp.ne.s32.totalorder %s204, %s206
      %p210 = scmp.eq.s32.totalorder %s28, 0
      %p211 = por %p209, %p210
      %p212 = scmp.ne.s32.totalorder %s204, %s206
      %p213 = scmp.eq.s32.totalorder %s33, 15
      %p214 = por %p212, %p213
      %p215 = scmp.ne.s32.totalorder %s206, %s207
      %p216 = scmp.eq.s32.totalorder %s33, 0
      %p217 = por %p215, %p216
      %p218 = scmp.ne.s32.totalorder %s206, %s207
      %p219 = scmp.eq.s32.totalorder %s34, 15
      %p220 = por %p218, %p219
      %p222 = scmp.ne.s32.totalorder %s207, %s221
      %p223 = scmp.eq.s32.totalorder %s34, 0
      %p224 = por %p222, %p223
      %s225 = ssub.s32 %s35, %s47
      %p226 = scmp.eq.s32.totalorder %s225, 0
      %s228 = sadd.s32 %s227, 1
      %s229 = scalar_select %p226, %s227, %s228
      %p232 = pneg %p226
      %p233 = scmp.eq.s32.totalorder %s28, 15
      %p234 = por %p232, %p233
      %p235 = scmp.ne.s32.totalorder %s227, %s230
      %p236 = scmp.eq.s32.totalorder %s28, 0
      %p237 = por %p235, %p236
      %p238 = scmp.ne.s32.totalorder %s227, %s230
      %p239 = scmp.eq.s32.totalorder %s33, 15
      %p240 = por %p238, %p239
      %p241 = scmp.ne.s32.totalorder %s230, %s231
      %p242 = scmp.eq.s32.totalorder %s33, 0
      %p243 = por %p241, %p242
      %p244 = scmp.ne.s32.totalorder %s230, %s231
      %p245 = scmp.eq.s32.totalorder %s34, 15
      %p246 = por %p244, %p245
      %p248 = scmp.ne.s32.totalorder %s231, %s247
      %p249 = scmp.eq.s32.totalorder %s34, 0
      %p250 = por %p248, %p249
      %p251 = scmp.le.s32.totalorder 1, %s28
      %p252 = scmp.lt.s32.totalorder %s28, 17
      %p253 = pnand %p251, %p252
      %p254 = pneg %p253
      // Predicated region
      $region9: #{tpu_custom_call.1} parent=5 // pred_check
        _
      $region10: #{tpu_custom_call.1} parent=5 // pred_check_branch
        %256 = sbr.rel (%p253) target = $region12
      $region11: #{tpu_custom_call.1} parent=5 // pred_region
        %s257 = ssub.s32 %s28, 1
        // Predicated region
        $region13: #{tpu_custom_call.1} parent=11 // pred_check
          %p258 = pneg %p217
        $region14: #{tpu_custom_call.1} parent=11 // pred_check_branch
          %260 = sbr.rel (%p258) target = $region16
        $region15: #{tpu_custom_call.1} parent=11 // pred_region
          _
        $region16: #{tpu_custom_call.1} parent=11 // pred_fallthru
          _
      $region12: #{tpu_custom_call.1} parent=5 // pred_fallthru
        _
      %p261 = scmp.lt.s32.totalorder %s28, 16
      // Predicated region
      $region17: #{tpu_custom_call.1} parent=5 // pred_check
        %p262 = pneg %p261
      $region18: #{tpu_custom_call.1} parent=5 // pred_check_branch
        %264 = sbr.rel (%p262) target = $region20
      $region19: #{tpu_custom_call.1} parent=5 // pred_region
        // Predicated region
        $region21: #{tpu_custom_call.1} parent=19 // pred_check
          %p265 = pneg %p60
        $region22: #{tpu_custom_call.1} parent=19 // pred_check_branch
          %267 = sbr.rel (%p265) target = $region24
        $region23: #{tpu_custom_call.1} parent=19 // pred_region
          %s268 = sand.u32 %s50, 1
          %s269 = scalar_lea.sflag [#allocation4], %s268
          %s270 = sand.u32 %s50, 1
          %s271 = smul.addr %s270, 16
          %s272 = scalar_lea.vmem [#allocation3], %s271
          %274 = vsyncadd %s269, 0
          %s275 = smul.addr %s35, 2
          %s276 = smul.addr %s275, 8
          %s277 = scalar_lea.hbm %s0, %s276
          %s278 = sshll.u32 %s277, 4
          %s279 = int_to_ptr.hbm [resolvable:$true] %s278
          %s280 = sshll.u32 %s272, 4
          %s281 = int_to_ptr.vmem [resolvable:$true] %s280
          %286 = dma.hbm_to_vmem [thread:$0]  %s279, 256, %s281, %s269, 128, 128, 8
        $region24: #{tpu_custom_call.1} parent=19 // pred_fallthru
          _
        // Predicated region
        $region25: #{tpu_custom_call.1} parent=19 // pred_check
          %p287 = pneg %p86
        $region26: #{tpu_custom_call.1} parent=19 // pred_check_branch
          %289 = sbr.rel (%p287) target = $region28
        $region27: #{tpu_custom_call.1} parent=19 // pred_region
          %s290 = sand.u32 %s28, 1
          %s291 = scalar_lea.sflag [#allocation7], %s290
          %s292 = sand.u32 %s76, 1
          %s293 = smul.addr %s292, 16
          %s294 = scalar_lea.vmem [#allocation6], %s293
          %296 = vsyncadd %s291, 0
          %s297 = smul.addr %s36, 4
          %s298 = smul.addr %s297, 4
          %s299 = scalar_lea.hbm %s1, %s298
          %s300 = sshll.u32 %s299, 4
          %s301 = int_to_ptr.hbm [resolvable:$true] %s300
          %s302 = sshll.u32 %s294, 4
          %s303 = int_to_ptr.vmem [resolvable:$true] %s302
          %308 = dma.hbm_to_vmem [thread:$0]  %s301, 256, %s303, %s291, 64, 64, 4
        $region28: #{tpu_custom_call.1} parent=19 // pred_fallthru
          _
        // Predicated region
        $region29: #{tpu_custom_call.1} parent=19 // pred_check
          %p309 = pneg %p112
        $region30: #{tpu_custom_call.1} parent=19 // pred_check_branch
          %311 = sbr.rel (%p309) target = $region32
        $region31: #{tpu_custom_call.1} parent=19 // pred_region
          %s312 = sand.u32 %s28, 1
          %s313 = scalar_lea.sflag [#allocation7], %s312
          %s314 = sand.u32 %s102, 1
          %s315 = smul.addr %s314, 16
          %s316 = scalar_lea.vmem [#allocation8], %s315
          %318 = vsyncadd %s313, 0
          %s319 = smul.addr %s36, 4
          %s320 = smul.addr %s319, 4
          %s321 = scalar_lea.hbm %s2, %s320
          %s322 = sshll.u32 %s321, 4
          %s323 = int_to_ptr.hbm [resolvable:$true] %s322
          %s324 = sshll.u32 %s316, 4
          %s325 = int_to_ptr.vmem [resolvable:$true] %s324
          %330 = dma.hbm_to_vmem [thread:$0]  %s323, 256, %s325, %s313, 64, 64, 4
        $region32: #{tpu_custom_call.1} parent=19 // pred_fallthru
          _
        // Predicated region
        $region33: #{tpu_custom_call.1} parent=19 // pred_check
          %p331 = pneg %p138
        $region34: #{tpu_custom_call.1} parent=19 // pred_check_branch
          %333 = sbr.rel (%p331) target = $region36
        $region35: #{tpu_custom_call.1} parent=19 // pred_region
          %s334 = sand.u32 %s28, 1
          %s335 = scalar_lea.sflag [#allocation10], %s334
          %s336 = sand.u32 %s128, 1
          %s337 = smul.addr %s336, 16
          %s338 = scalar_lea.vmem [#allocation9], %s337
          %340 = vsyncadd %s335, 0
          %s341 = smul.addr %s36, 4
          %s342 = smul.addr %s341, 4
          %s343 = scalar_lea.hbm %s3, %s342
          %s344 = sshll.u32 %s343, 4
          %s345 = int_to_ptr.hbm [resolvable:$true] %s344
          %s346 = sshll.u32 %s338, 4
          %s347 = int_to_ptr.vmem [resolvable:$true] %s346
          %352 = dma.hbm_to_vmem [thread:$0]  %s345, 256, %s347, %s335, 64, 64, 4
        $region36: #{tpu_custom_call.1} parent=19 // pred_fallthru
          _
        // Predicated region
        $region37: #{tpu_custom_call.1} parent=19 // pred_check
          %p353 = pneg %p164
        $region38: #{tpu_custom_call.1} parent=19 // pred_check_branch
          %355 = sbr.rel (%p353) target = $region40
        $region39: #{tpu_custom_call.1} parent=19 // pred_region
          %s356 = sand.u32 %s28, 1
          %s357 = scalar_lea.sflag [#allocation10], %s356
          %s358 = sand.u32 %s154, 1
          %s359 = smul.addr %s358, 16
          %s360 = scalar_lea.vmem [#allocation11], %s359
          %362 = vsyncadd %s357, 0
          %s363 = smul.addr %s36, 2
          %s364 = smul.addr %s363, 8
          %s365 = scalar_lea.hbm %s4, %s364
          %s366 = sshll.u32 %s365, 4
          %s367 = int_to_ptr.hbm [resolvable:$true] %s366
          %s368 = sshll.u32 %s360, 4
          %s369 = int_to_ptr.vmem [resolvable:$true] %s368
          %374 = dma.hbm_to_vmem [thread:$0]  %s367, 256, %s369, %s357, 128, 128, 8
        $region40: #{tpu_custom_call.1} parent=19 // pred_fallthru
          _
        // Predicated region
        $region41: #{tpu_custom_call.1} parent=19 // pred_check
          %p375 = pneg %p190
        $region42: #{tpu_custom_call.1} parent=19 // pred_check_branch
          %377 = sbr.rel (%p375) target = $region44
        $region43: #{tpu_custom_call.1} parent=19 // pred_region
          %s378 = sand.u32 %s180, 1
          %s379 = scalar_lea.sflag [#allocation13], %s378
          %s380 = sand.u32 %s180, 1
          %s381 = smul.addr %s380, 16
          %s382 = scalar_lea.vmem [#allocation12], %s381
          %384 = vsyncadd %s379, 0
          %s385 = smul.addr %s36, 4
          %s386 = smul.addr %s385, 4
          %s387 = scalar_lea.hbm %s5, %s386
          %s388 = sshll.u32 %s387, 4
          %s389 = int_to_ptr.hbm [resolvable:$true] %s388
          %s390 = sshll.u32 %s382, 4
          %s391 = int_to_ptr.vmem [resolvable:$true] %s390
          %396 = dma.hbm_to_vmem [thread:$0]  %s389, 256, %s391, %s379, 64, 64, 4
        $region44: #{tpu_custom_call.1} parent=19 // pred_fallthru
          _
      $region20: #{tpu_custom_call.1} parent=5 // pred_fallthru
        _
      %p397 = scmp.le.s32.totalorder 1, %s28
      %p398 = scmp.lt.s32.totalorder %s28, 17
      %p399 = pnand %p397, %p398
      %p400 = pneg %p399
      // Predicated region
      $region45: #{tpu_custom_call.1} parent=5 // pred_check
        _
      $region46: #{tpu_custom_call.1} parent=5 // pred_check_branch
        %402 = sbr.rel (%p399) target = $region48
      $region47: #{tpu_custom_call.1} parent=5 // pred_region
        %s403 = ssub.s32 %s28, 1
        %s404 = sand.u32 %s53, 1
        %s405 = scalar_lea.sflag [#allocation4], %s404
        %s406 = sand.u32 %s53, 1
        %s407 = smul.addr %s406, 16
        %s408 = scalar_lea.vmem [#allocation3], %s407
        // Predicated region
        $region49: #{tpu_custom_call.1} parent=47 // pred_check
          %p409 = pneg %p66
        $region50: #{tpu_custom_call.1} parent=47 // pred_check_branch
          %411 = sbr.rel (%p409) target = $region52
        $region51: #{tpu_custom_call.1} parent=47 // pred_region
          %413 = dma.done %s405, 256
        $region52: #{tpu_custom_call.1} parent=47 // pred_fallthru
          _
        %s414 = sand.u32 %s33, 1
        %s415 = scalar_lea.sflag [#allocation7], %s414
        %s416 = sand.u32 %s79, 1
        %s417 = smul.addr %s416, 16
        %s418 = scalar_lea.vmem [#allocation6], %s417
        // Predicated region
        $region53: #{tpu_custom_call.1} parent=47 // pred_check
          %p419 = pneg %p92
        $region54: #{tpu_custom_call.1} parent=47 // pred_check_branch
          %421 = sbr.rel (%p419) target = $region56
        $region55: #{tpu_custom_call.1} parent=47 // pred_region
          %423 = dma.done %s415, 256
        $region56: #{tpu_custom_call.1} parent=47 // pred_fallthru
          _
        %s424 = sand.u32 %s33, 1
        %s425 = scalar_lea.sflag [#allocation7], %s424
        %s426 = sand.u32 %s105, 1
        %s427 = smul.addr %s426, 16
        %s428 = scalar_lea.vmem [#allocation8], %s427
        // Predicated region
        $region57: #{tpu_custom_call.1} parent=47 // pred_check
          %p429 = pneg %p118
        $region58: #{tpu_custom_call.1} parent=47 // pred_check_branch
          %431 = sbr.rel (%p429) target = $region60
        $region59: #{tpu_custom_call.1} parent=47 // pred_region
          %433 = dma.done %s425, 256
        $region60: #{tpu_custom_call.1} parent=47 // pred_fallthru
          _
        %s434 = sand.u32 %s33, 1
        %s435 = scalar_lea.sflag [#allocation10], %s434
        %s436 = sand.u32 %s131, 1
        %s437 = smul.addr %s436, 16
        %s438 = scalar_lea.vmem [#allocation9], %s437
        // Predicated region
        $region61: #{tpu_custom_call.1} parent=47 // pred_check
          %p439 = pneg %p144
        $region62: #{tpu_custom_call.1} parent=47 // pred_check_branch
          %441 = sbr.rel (%p439) target = $region64
        $region63: #{tpu_custom_call.1} parent=47 // pred_region
          %443 = dma.done %s435, 256
        $region64: #{tpu_custom_call.1} parent=47 // pred_fallthru
          _
        %s444 = sand.u32 %s33, 1
        %s445 = scalar_lea.sflag [#allocation10], %s444
        %s446 = sand.u32 %s157, 1
        %s447 = smul.addr %s446, 16
        %s448 = scalar_lea.vmem [#allocation11], %s447
        // Predicated region
        $region65: #{tpu_custom_call.1} parent=47 // pred_check
          %p449 = pneg %p170
        $region66: #{tpu_custom_call.1} parent=47 // pred_check_branch
          %451 = sbr.rel (%p449) target = $region68
        $region67: #{tpu_custom_call.1} parent=47 // pred_region
          %453 = dma.done %s445, 256
        $region68: #{tpu_custom_call.1} parent=47 // pred_fallthru
          _
        %s454 = sand.u32 %s183, 1
        %s455 = scalar_lea.sflag [#allocation13], %s454
        %s456 = sand.u32 %s183, 1
        %s457 = smul.addr %s456, 16
        %s458 = scalar_lea.vmem [#allocation12], %s457
        // Predicated region
        $region69: #{tpu_custom_call.1} parent=47 // pred_check
          %p459 = pneg %p196
        $region70: #{tpu_custom_call.1} parent=47 // pred_check_branch
          %461 = sbr.rel (%p459) target = $region72
        $region71: #{tpu_custom_call.1} parent=47 // pred_region
          %463 = dma.done %s455, 256
        $region72: #{tpu_custom_call.1} parent=47 // pred_fallthru
          _
        %s464 = sand.u32 %s53, 1
        %s465 = scalar_lea.sflag [#allocation4], %s464
        %s466 = sand.u32 %s53, 1
        %s467 = smul.addr %s466, 16
        %s468 = scalar_lea.vmem [#allocation3], %s467
        %p469 = pneg %p66
        %p470 = pneg %p63
        %s471 = sand.u32 %s33, 1
        %s472 = scalar_lea.sflag [#allocation7], %s471
        %s473 = sand.u32 %s79, 1
        %s474 = smul.addr %s473, 16
        %s475 = scalar_lea.vmem [#allocation6], %s474
        %p476 = pneg %p92
        %p477 = pneg %p89
        %s478 = sand.u32 %s33, 1
        %s479 = scalar_lea.sflag [#allocation7], %s478
        %s480 = sand.u32 %s105, 1
        %s481 = smul.addr %s480, 16
        %s482 = scalar_lea.vmem [#allocation8], %s481
        %p483 = pneg %p118
        %p484 = pneg %p115
        %s485 = sand.u32 %s33, 1
        %s486 = scalar_lea.sflag [#allocation10], %s485
        %s487 = sand.u32 %s131, 1
        %s488 = smul.addr %s487, 16
        %s489 = scalar_lea.vmem [#allocation9], %s488
        %p490 = pneg %p144
        %p491 = pneg %p141
        %s492 = sand.u32 %s33, 1
        %s493 = scalar_lea.sflag [#allocation10], %s492
        %s494 = sand.u32 %s157, 1
        %s495 = smul.addr %s494, 16
        %s496 = scalar_lea.vmem [#allocation11], %s495
        %p497 = pneg %p170
        %p498 = pneg %p167
        %s499 = sand.u32 %s183, 1
        %s500 = scalar_lea.sflag [#allocation13], %s499
        %s501 = sand.u32 %s183, 1
        %s502 = smul.addr %s501, 16
        %s503 = scalar_lea.vmem [#allocation12], %s502
        %p504 = pneg %p196
        %p505 = pneg %p193
        %p506 = pneg %p217
        %p507 = pneg %p214
        %p508 = pneg %p243
        %p509 = pneg %p240
        %s510 = sand.u32 %s230, 1
        %s511 = scalar_lea.sflag [#allocation5], %s510
        %s512 = sand.u32 %s230, 1
        %s513 = smul.addr %s512, 16
        %s514 = scalar_lea.vmem [#allocation14], %s513
        %p516 = scmp.eq.s32.totalorder %s38, 0
        // Predicated region
        $region73: #{tpu_custom_call.1} parent=47 // pred_check
          %p517 = pneg %p516
        $region74: #{tpu_custom_call.1} parent=47 // pred_check_branch
          %519 = sbr.rel (%p517) target = $region76
        $region75: #{tpu_custom_call.1} parent=47 // pred_region
          %vm520 = vcmask 261120
          %521 = vst.msk [vmem:[#allocation2] sm:$0xff] %vm520, 0.0
          %522 = vst.msk [vmem:[#allocation2 + $0x8] sm:$0xff] %vm520, 0.0
        $region76: #{tpu_custom_call.1} parent=47 // pred_fallthru
          _
        %v523 = vld [vmem:[%s408] sm:$0xff]
        %v524 = vld [vmem:[%s408 + $0x8] sm:$0xff]
        %v525 = vpack.c.bf16 %v524, %v523
        %v526 = vld [vmem:[%s418] sm:$0xf]
        %v527 = vld [vmem:[%s418 + $0x4] sm:$0xf]
        %v528 = vld [vmem:[%s418 + $0x8] sm:$0xf]
        %v529 = vld [vmem:[%s418 + $0xc] sm:$0xf]
        %v534 = vunpack.c.l.b16 %v526
        %v535 = vunpack.c.l.b16 %v527
        %v536 = vunpack.c.l.b16 %v528
        %v537 = vunpack.c.l.b16 %v529
        %v538 = vpack.c.b16 %v535, %v534
        %v539 = vpack.c.b16 %v537, %v536
        %vm542 = vcmask 261120
        %v544 = vsel %vm542, %v525, 0
        %546 = vmatpush.bf16.msra.mxu0 0
        %547 = vmatpush.bf16.msra.mxu0 0
        %548 = vmatpush.bf16.msra.mxu0 0
        %549 = vmatpush.bf16.msra.mxu0 0
        %550 = vmatpush.bf16.msra.mxu0 0
        %551 = vmatpush.bf16.msra.mxu0 0
        %552 = vmatpush.bf16.msra.mxu0 %v539
        %553 = vmatpush.bf16.msra.mxu0 %v538
        %554 = vmatmul.bf16.gmra.mxu0 %v544
        %v555 = vpop.f32.mrf.mxu0
        %v556 = vadd.f32 0.0, %v555
        %v557 = vpop.f32.mrf.mxu0
        %v558 = vadd.f32 0.0, %v557
        %559 = vdwg.mxu0
        %v560 = vld [vmem:[%s428] sm:$0xf]
        %v561 = vld [vmem:[%s428 + $0x4] sm:$0xf]
        %v562 = vld [vmem:[%s428 + $0x8] sm:$0xf]
        %v563 = vld [vmem:[%s428 + $0xc] sm:$0xf]
        %v568 = vunpack.c.l.b16 %v560
        %v569 = vunpack.c.l.b16 %v561
        %v570 = vunpack.c.l.b16 %v562
        %v571 = vunpack.c.l.b16 %v563
        %v572 = vpack.c.b16 %v569, %v568
        %v573 = vpack.c.b16 %v571, %v570
        %576 = vmatpush.bf16.msra.mxu0 0
        %577 = vmatpush.bf16.msra.mxu0 0
        %578 = vmatpush.bf16.msra.mxu0 0
        %579 = vmatpush.bf16.msra.mxu0 0
        %580 = vmatpush.bf16.msra.mxu0 0
        %581 = vmatpush.bf16.msra.mxu0 0
        %582 = vmatpush.bf16.msra.mxu0 %v573
        %583 = vmatpush.bf16.msra.mxu0 %v572
        %584 = vmatmul.bf16.gmra.mxu0 %v544
        %v585 = vpop.f32.mrf.mxu0
        %v586 = vadd.f32 0.0, %v585
        %v587 = vpop.f32.mrf.mxu0
        %v588 = vadd.f32 0.0, %v587
        %589 = vdwg.mxu0
        %v590 = vld [vmem:[%s438] sm:$0xf]
        %v591 = vld [vmem:[%s438 + $0x4] sm:$0xf]
        %v592 = vld [vmem:[%s438 + $0x8] sm:$0xf]
        %v593 = vld [vmem:[%s438 + $0xc] sm:$0xf]
        %v598 = vunpack.c.l.b16 %v590
        %v599 = vunpack.c.l.b16 %v591
        %v600 = vunpack.c.l.b16 %v592
        %v601 = vunpack.c.l.b16 %v593
        %v602 = vpack.c.b16 %v599, %v598
        %v603 = vpack.c.b16 %v601, %v600
        %606 = vmatpush.bf16.msra.mxu0 0
        %607 = vmatpush.bf16.msra.mxu0 0
        %608 = vmatpush.bf16.msra.mxu0 0
        %609 = vmatpush.bf16.msra.mxu0 0
        %610 = vmatpush.bf16.msra.mxu0 0
        %611 = vmatpush.bf16.msra.mxu0 0
        %612 = vmatpush.bf16.msra.mxu0 %v603
        %613 = vmatpush.bf16.msra.mxu0 %v602
        %614 = vmatmul.bf16.gmra.mxu0 %v544
        %v615 = vpop.f32.mrf.mxu0
        %v616 = vadd.f32 0.0, %v615
        %v617 = vpop.f32.mrf.mxu0
        %v618 = vadd.f32 0.0, %v617
        %619 = vdwg.mxu0
        %v620 = vmul.f32 %v556, 0.17677669
        %v621 = vmul.f32 %v558, 0.17677669
        %v622 = vpack.c.bf16 %v620, %v620
        %v623 = vpack.c.bf16 %v621, %v621
        %v624 = vpack.c.bf16 %v586, %v586
        %v625 = vpack.c.bf16 %v588, %v588
        %v626 = vpack.c.bf16 %v616, %v616
        %v627 = vpack.c.bf16 %v618, %v618
        %v628 = vld [vmem:[%s448] sm:$0xff]
        %v629 = vld [vmem:[%s448 + $0x8] sm:$0xff]
        %v632 = vunpack.c.l.b16 %v622
        %v633 = vunpack.c.l.b16 %v623
        %v634 = vpack.c.b16 %v633, %v632
        %v637 = vunpack.c.l.b16 %v624
        %v638 = vunpack.c.l.b16 %v625
        %v639 = vpack.c.b16 %v638, %v637
        %v641 = vsel %vm542, %v634, 0
        %v644 = vsel %vm542, %v639, 0
        %646 = vmatpush.bf16.xpose.msra.mxu0 0
        %647 = vmatpush.bf16.xpose.msra.mxu0 0
        %648 = vmatpush.bf16.xpose.msra.mxu0 0
        %649 = vmatpush.bf16.xpose.msra.mxu0 0
        %650 = vmatpush.bf16.xpose.msra.mxu0 0
        %651 = vmatpush.bf16.xpose.msra.mxu0 0
        %652 = vmatpush.bf16.xpose.msra.mxu0 0
        %653 = vmatpush.bf16.xpose.msra.mxu0 %v644
        %654 = vmatmul.bf16.gmra.mxu0 %v641
        %v655 = vpop.f32.mrf.mxu0
        %v656 = vadd.f32 %v628, %v655
        %v657 = vpop.f32.mrf.mxu0
        %v658 = vadd.f32 %v629, %v657
        %659 = vdwg.mxu0
        %vm660 = vcmask 130048
        %v661 = vsel %vm660, %v656, -inf
        %662 = vmax.xlane.f32.xlu0 %v661
        %v663 = vpop.xlane.xlu0 %662
        %v664 = vsel %vm660, %v658, -inf
        %665 = vmax.xlane.f32.xlu0 %v664
        %v666 = vpop.xlane.xlu0 %665
        %v667 = vsub.f32 %v656, %v663
        %v668 = vsub.f32 %v658, %v666
        %v669 = vmul.f32 %v667, 1.442695
        %v670 = vpow.pop %v669
        %v671 = vmul.f32 %v668, 1.442695
        %v672 = vpow.pop %v671
        %v673 = vsel %vm660, %v670, 0.0
        %674 = vadd.xlane.f32.xlu0 %v673
        %v675 = vpop.xlane.xlu0 %674
        %v676 = vsel %vm660, %v672, 0.0
        %677 = vadd.xlane.f32.xlu0 %v676
        %v678 = vpop.xlane.xlu0 %677
        %v679 = vrcp.pop %v675
        %v680 = vrcp.pop %v678
        %v681 = vmul.f32 %v670, %v679
        %v682 = vmul.f32 %v672, %v680
        %v683 = vpack.c.bf16 %v681, %v681
        %v684 = vpack.c.bf16 %v682, %v682
        %v687 = vunpack.c.l.b16 %v683
        %v688 = vunpack.c.l.b16 %v684
        %v689 = vpack.c.b16 %v688, %v687
        %v692 = vunpack.c.l.b16 %v626
        %v693 = vunpack.c.l.b16 %v627
        %v694 = vpack.c.b16 %v693, %v692
        %v697 = vsel %vm660, %v689, 0
        %699 = vmatpush.bf16.msra.mxu0 0
        %700 = vmatpush.bf16.msra.mxu0 0
        %701 = vmatpush.bf16.msra.mxu0 0
        %702 = vmatpush.bf16.msra.mxu0 0
        %703 = vmatpush.bf16.msra.mxu0 0
        %704 = vmatpush.bf16.msra.mxu0 0
        %705 = vmatpush.bf16.msra.mxu0 0
        %706 = vmatpush.bf16.msra.mxu0 %v694
        %707 = vmatmul.bf16.gmra.mxu0 %v697
        %v708 = vpop.f32.mrf.mxu0
        %v709 = vadd.f32 0.0, %v708
        %v710 = vpop.f32.mrf.mxu0
        %v711 = vadd.f32 0.0, %v710
        %712 = vdwg.mxu0
        %v713 = vld [vmem:[#allocation2] sm:$0xff]
        %v714 = vld [vmem:[#allocation2 + $0x8] sm:$0xff]
        %v715 = vpack.c.bf16 %v711, %v709
        %v716 = vld [vmem:[%s458] sm:$0xf]
        %v717 = vld [vmem:[%s458 + $0x4] sm:$0xf]
        %v718 = vld [vmem:[%s458 + $0x8] sm:$0xf]
        %v719 = vld [vmem:[%s458 + $0xc] sm:$0xf]
        %v724 = vunpack.c.l.b16 %v716
        %v725 = vunpack.c.l.b16 %v717
        %v726 = vunpack.c.l.b16 %v718
        %v727 = vunpack.c.l.b16 %v719
        %v728 = vpack.c.b16 %v725, %v724
        %v729 = vpack.c.b16 %v727, %v726
        %v733 = vsel %vm542, %v715, 0
        %735 = vmatpush.bf16.msra.mxu0 0
        %736 = vmatpush.bf16.msra.mxu0 0
        %737 = vmatpush.bf16.msra.mxu0 0
        %738 = vmatpush.bf16.msra.mxu0 0
        %739 = vmatpush.bf16.msra.mxu0 0
        %740 = vmatpush.bf16.msra.mxu0 0
        %741 = vmatpush.bf16.msra.mxu0 %v729
        %742 = vmatpush.bf16.msra.mxu0 %v728
        %743 = vmatmul.bf16.gmra.mxu0 %v733
        %v744 = vpop.f32.mrf.mxu0
        %v745 = vadd.f32 0.0, %v744
        %v746 = vpop.f32.mrf.mxu0
        %v747 = vadd.f32 0.0, %v746
        %748 = vdwg.mxu0
        %v749 = vadd.f32 %v713, %v745
        %v750 = vadd.f32 %v714, %v747
        %751 = vst.msk [vmem:[#allocation2] sm:$0xff] %vm542, %v749
        %752 = vst.msk [vmem:[#allocation2 + $0x8] sm:$0xff] %vm542, %v750
        %p753 = scmp.eq.s32.totalorder %s38, 7
        // Predicated region
        $region77: #{tpu_custom_call.1} parent=47 // pred_check
          %p754 = pneg %p753
        $region78: #{tpu_custom_call.1} parent=47 // pred_check_branch
          %756 = sbr.rel (%p754) target = $region80
        $region79: #{tpu_custom_call.1} parent=47 // pred_region
          %v757 = vld [vmem:[#allocation2] sm:$0xff]
          %v758 = vld [vmem:[#allocation2 + $0x8] sm:$0xff]
          %v759 = vld [vmem:[%s6] sm:$0x1]
          %v761 = vperm.slane %v759, 0
          %v763 = vadd.f32 %v757, %v761
          %v764 = vadd.f32 %v758, %v761
          %765 = vst.msk [vmem:[%s514] sm:$0xff] %vm542, %v763
          %766 = vst.msk [vmem:[%s514 + $0x8] sm:$0xff] %vm542, %v764
        $region80: #{tpu_custom_call.1} parent=47 // pred_fallthru
          _
        %s767 = sand.u32 %s230, 1
        %s768 = scalar_lea.sflag [#allocation5], %s767
        %s769 = sand.u32 %s230, 1
        %s770 = smul.addr %s769, 16
        %s771 = scalar_lea.vmem [#allocation14], %s770
        // Predicated region
        $region81: #{tpu_custom_call.1} parent=47 // pred_check
          %p772 = pneg %p240
        $region82: #{tpu_custom_call.1} parent=47 // pred_check_branch
          %774 = sbr.rel (%p772) target = $region84
        $region83: #{tpu_custom_call.1} parent=47 // pred_region
          %776 = vsyncadd %s768, 0
          %s777 = smul.addr %s37, 2
          %s778 = smul.addr %s777, 8
          %s779 = scalar_lea.hbm %s7, %s778
          %s780 = sshll.u32 %s771, 4
          %s781 = int_to_ptr.vmem [resolvable:$true] %s780
          %s782 = sshll.u32 %s779, 4
          %s783 = int_to_ptr.hbm [resolvable:$true] %s782
          %788 = dma.vmem_to_hbm [thread:$0]  %s781, 256, %s783, %s768, 128, 128, 8
        $region84: #{tpu_custom_call.1} parent=47 // pred_fallthru
          _
      $region48: #{tpu_custom_call.1} parent=5 // pred_fallthru
        _
      %p789 = scmp.le.s32.totalorder 2, %s28
      // Predicated region
      $region85: #{tpu_custom_call.1} parent=5 // pred_check
        %p790 = pneg %p789
      $region86: #{tpu_custom_call.1} parent=5 // pred_check_branch
        %792 = sbr.rel (%p790) target = $region88
      $region87: #{tpu_custom_call.1} parent=5 // pred_region
        %s793 = ssub.s32 %s28, 2
        // Predicated region
        $region89: #{tpu_custom_call.1} parent=87 // pred_check
          %p794 = pneg %p246
        $region90: #{tpu_custom_call.1} parent=87 // pred_check_branch
          %796 = sbr.rel (%p794) target = $region92
        $region91: #{tpu_custom_call.1} parent=87 // pred_region
          %s797 = sand.u32 %s231, 1
          %s798 = scalar_lea.sflag [#allocation5], %s797
          %s799 = sand.u32 %s231, 1
          %s800 = smul.addr %s799, 16
          %s801 = scalar_lea.vmem [#allocation14], %s800
          %803 = dma.done %s798, 256
        $region92: #{tpu_custom_call.1} parent=87 // pred_fallthru
          _
      $region88: #{tpu_custom_call.1} parent=5 // pred_fallthru
        _
    $region6: #{tpu_custom_call.1} parent=1 // loop_footer
      %s32 = sadd.s32 1, %s28
    $region7: #{tpu_custom_call.1} parent=1 // loop_footer_branch
      %27 = sbr.rel target = $region3
    $region8: #{tpu_custom_call.1} parent=1 // loop_exit
      _
    %804 = vsyncpa [#allocation4], 1
    %s805 = scalar_lea.sflag [#allocation4], 1
    %806 = vsyncpa %s805, 1
    %807 = vsyncpa [#allocation7], 1
    %s808 = scalar_lea.sflag [#allocation7], 1
    %809 = vsyncpa %s808, 1
    %810 = vsyncpa [#allocation10], 1
    %s811 = scalar_lea.sflag [#allocation10], 1
    %812 = vsyncpa %s811, 1
    %813 = vsyncpa [#allocation13], 1
    %s814 = scalar_lea.sflag [#allocation13], 1
    %815 = vsyncpa %s814, 1
    %816 = vsyncpa [#allocation5], 1
    %s817 = scalar_lea.sflag [#allocation5], 1
    %818 = vsyncpa %s817, 1

</llo_original>
